<compile_context>
chip_gen: v7x
topology: tpu7x:2x2x1
jax: 0.10.0
libtpu: 0.0.40
codegen_flags: <defaults>
</compile_context>

<pallas_src>
import functools

import jax
import jax.numpy as jnp
from jax.experimental import pallas as pl
from jax.experimental.pallas import tpu as pltpu

EPS = 1e-5
_MIB = 1024 * 1024


def _round_up(v, m):
    return (v + m - 1) // m * m


def _vmem_capacity_bytes():
    try:
        return int(pltpu.get_tpu_info().vmem_capacity_bytes)
    except Exception:
        return 64 * _MIB  # conservative (v7x-sized) fallback


def _linear_bn_kernel(x_ref, w_ref, b_ref, g_ref, be_ref, o_ref, *, n_valid):
    k = pl.program_id(1)

    @pl.when(k == 0)
    def _():
        o_ref[...] = jnp.zeros_like(o_ref)

    # MXU: bf16 operands, f32 accumulation directly into the resident output
    # block (its index_map ignores k, so the block stays in VMEM across K).
    o_ref[...] += jnp.dot(x_ref[...].astype(jnp.bfloat16), w_ref[...],
                          preferred_element_type=jnp.float32)

    @pl.when(k == pl.num_programs(1) - 1)
    def _():
        acc = o_ref[...]                      # (n_pad, tn) f32, pre-bias
        n_pad = acc.shape[0]
        inv_n = jnp.float32(1.0 / n_valid)
        bias = b_ref[...]

        # Padded x rows are zero => padded pre-bias rows are zero, so the mean
        # needs no row mask: mean(y) = sum(acc)/n + bias.
        mean = jnp.sum(acc, axis=0, keepdims=True) * inv_n + bias
        y = acc + bias
        if n_pad != n_valid:
            # Only the variance centering needs the valid-row mask.
            row = jax.lax.broadcasted_iota(jnp.int32, acc.shape, 0)
            centered = jnp.where(row < n_valid, y - mean, 0.0)
        else:
            centered = y - mean
        var = jnp.sum(centered * centered, axis=0, keepdims=True) * inv_n
        inv_std = jax.lax.rsqrt(var + EPS)    # EUP slot, effectively free

        # Fused per-column affine: out = y * scale + shift (single store pass).
        scale = g_ref[...] * inv_std
        shift = be_ref[...] - mean * scale
        o_ref[...] = y * scale + shift


def prepare_params(weight, bias, gamma, beta, *, batch_hint=128, tn=None, tk=None):
    """One-time parameter prep.

    Transposes the PyTorch (out_c, in_c) weight to a persistent (k_pad, oc_pad)
    bfloat16 layout with BOTH the lane (out_c) and contraction (K) padding done
    here, so the per-call path never pads the weight. Tile sizes are chosen
    from the actual VMEM capacity of the chip generation.
    """
    out_c, in_c = weight.shape
    vmem_cap = _vmem_capacity_bytes()
    big_vmem = vmem_cap >= 96 * _MIB          # v5e/v6e: 128 MiB; v7x: 64 MiB

    # out_c tile: lane-dense. 512 on 128-MiB parts cuts x re-streaming across
    # the j axis; 256 on small-VMEM parts, where we also prefer >=2 j tiles so
    # v7x's two TensorCores both get work on the "parallel" axis.
    if tn is None:
        tn = 512 if big_vmem else 256
    oc_base = _round_up(out_c, 128)
    tn = min(tn, oc_base)
    if not big_vmem:
        while tn > 128 and _round_up(out_c, tn) == tn and oc_base > 128:
            tn //= 2
    oc_pad = _round_up(out_c, tn)

    # K tile: biggest that keeps the double-buffered f32 x slab within ~1/4 of
    # VMEM (x is streamed f32 and cast to bf16 in-kernel), capped at 2048.
    n_hint = _round_up(max(int(batch_hint), 8), 8)
    if tk is None:
        x_budget = vmem_cap // 4
        tk = min(2048, max(128, (x_budget // (2 * 4 * n_hint)) // 128 * 128))
    if in_c <= tk:
        tk, k_pad = in_c, in_c                # single K step, no K padding
    else:
        tk = max(128, tk // 128 * 128)
        k_pad = _round_up(in_c, tk)

    # Persistent bf16 transposed weight (MXU-native, half the HBM traffic).
    w_t = jnp.zeros((k_pad, oc_pad), jnp.bfloat16)
    w_t = w_t.at[:in_c, :out_c].set(weight.T.astype(jnp.bfloat16))

    def pad_row(v):
        return jnp.zeros((1, oc_pad), jnp.float32).at[0, :out_c].set(
            v.astype(jnp.float32))

    return {
        "w_t": w_t,
        "bias": pad_row(bias),
        "gamma": pad_row(gamma),
        "beta": pad_row(beta),
        "in_c": in_c,
        "out_c": out_c,
        "tn": tn,
        "tk": tk,
        "k_pad": k_pad,
        "vmem_cap": vmem_cap,
    }


def linear_batch_norm(x, params):
    """x: (N, in_c). Returns BatchNorm1d(Linear(x)) with training-mode batch stats."""
    n, in_c = x.shape
    assert in_c == params["in_c"], "x feature dim does not match prepared params"
    w_t = params["w_t"]
    out_c, tn, tk, k_pad = (params["out_c"], params["tn"], params["tk"],
                            params["k_pad"])
    oc_pad = w_t.shape[1]
    in_dtype = x.dtype

    # Pad x only when actually needed (common case: no per-call copy at all).
    n_pad = _round_up(n, 8)
    pad_rows, pad_k = n_pad - n, k_pad - in_c
    if pad_rows or pad_k:
        x = jnp.pad(x, ((0, pad_rows), (0, pad_k)))

    grid = (oc_pad // tn, k_pad // tk)
    # NOTE: x re-streaming across j could also be cut with a serpentine K order
    # in the index_maps; the larger tn on big-VMEM parts covers the same item.

    # Per-step VMEM footprint (double-buffered x/w/out + param rows).
    vmem_est = (2 * (n_pad * tk * 4)          # x, f32
                + 2 * (tk * tn * 2)           # w_t, bf16
                + 2 * (n_pad * tn * 4)        # output / accumulator, f32
                + 2 * 3 * (tn * 4))           # bias / gamma / beta rows
    vmem_limit = int(min(max(vmem_est * 3 // 2, 16 * _MIB),
                         params["vmem_cap"] * 3 // 4))

    cost = pl.CostEstimate(
        flops=2 * n * in_c * out_c + 8 * n * out_c,
        transcendentals=out_c,
        bytes_accessed=(4 * n * in_c * (oc_pad // tn)   # x re-streamed per j tile
                        + 2 * k_pad * oc_pad            # bf16 weight
                        + 4 * n * out_c + 3 * 4 * out_c),
    )

    kernel = functools.partial(_linear_bn_kernel, n_valid=n)

    out_padded = pl.pallas_call(
        kernel,
        out_shape=jax.ShapeDtypeStruct((n_pad, oc_pad), jnp.float32),
        grid_spec=pltpu.PrefetchScalarGridSpec(
            num_scalar_prefetch=0,
            grid=grid,
            in_specs=[
                pl.BlockSpec((n_pad, tk), lambda j, k: (0, k)),   # x
                pl.BlockSpec((tk, tn), lambda j, k: (k, j)),      # W^T (bf16)
                pl.BlockSpec((1, tn), lambda j, k: (0, j)),       # bias
                pl.BlockSpec((1, tn), lambda j, k: (0, j)),       # gamma
                pl.BlockSpec((1, tn), lambda j, k: (0, j)),       # beta
            ],
            out_specs=pl.BlockSpec((n_pad, tn), lambda j, k: (0, j)),
        ),
        compiler_params=pltpu.CompilerParams(
            dimension_semantics=("parallel", "arbitrary"),
            vmem_limit_bytes=vmem_limit,
        ),
        cost_estimate=cost,
    )(x, w_t, params["bias"], params["gamma"], params["beta"])

    out = out_padded[:n, :out_c]
    return out if in_dtype == jnp.float32 else out.astype(in_dtype)


if __name__ == "__main__":
    # Small shapes consistent with Linear(in_c, out_c) + BatchNorm1d(out_c).
    N, IN_C, OUT_C = 8, 32, 16

    key = jax.random.PRNGKey(0)
    kx, kw, kb = jax.random.split(key, 3)

    x = jax.random.normal(kx, (N, IN_C), dtype=jnp.float32)

    # Deterministic parameter init mimicking PyTorch defaults:
    # Linear: U(-1/sqrt(in_c), 1/sqrt(in_c)); BatchNorm: gamma=1, beta=0.
    bound = 1.0 / jnp.sqrt(jnp.float32(IN_C))
    weight = jax.random.uniform(kw, (OUT_C, IN_C), jnp.float32, -bound, bound)
    bias = jax.random.uniform(kb, (OUT_C,), jnp.float32, -bound, bound)
    gamma = jnp.ones((OUT_C,), jnp.float32)
    beta = jnp.zeros((OUT_C,), jnp.float32)

    params = prepare_params(weight, bias, gamma, beta, batch_hint=N)
    out = jax.block_until_ready(linear_batch_norm(x, params))

    # Tight check against a reference using the SAME bf16 matmul operands with
    # f32 accumulation (validates the kernel implementation itself).
    y_bf = jnp.dot(x.astype(jnp.bfloat16), weight.T.astype(jnp.bfloat16),
                   preferred_element_type=jnp.float32) + bias
    m_bf = y_bf.mean(axis=0, keepdims=True)
    v_bf = ((y_bf - m_bf) ** 2).mean(axis=0, keepdims=True)
    ref_bf = (y_bf - m_bf) * jax.lax.rsqrt(v_bf + EPS) * gamma + beta
    assert out.shape == ref_bf.shape, f"shape mismatch {out.shape} vs {ref_bf.shape}"
    assert jnp.allclose(out, ref_bf, atol=1e-5, rtol=1e-5), \
        "mismatch vs bf16-operand reference"

    # Looser sanity check against the pure-f32 PyTorch-semantics reference
    # (difference is only the bf16 operand rounding of the matmul).
    y32 = x @ weight.T + bias
    m32 = y32.mean(axis=0, keepdims=True)
    v32 = ((y32 - m32) ** 2).mean(axis=0, keepdims=True)
    ref32 = (y32 - m32) / jnp.sqrt(v32 + EPS) * gamma + beta
    assert jnp.allclose(out, ref32, atol=8e-2, rtol=8e-2), "mismatch vs f32 reference"

    print("KERNEL_OK")
</pallas_src>

<mosaic_0001>
module attributes {stable_mosaic.version = 11 : i64} {
  func.func @_linear_bn_kernel(%arg0: i32, %arg1: i32, %arg2: memref<8x32xf32, #tpu.memory_space<vmem>>, %arg3: memref<32x128xbf16, #tpu.memory_space<vmem>>, %arg4: memref<1x128xf32, #tpu.memory_space<vmem>>, %arg5: memref<1x128xf32, #tpu.memory_space<vmem>>, %arg6: memref<1x128xf32, #tpu.memory_space<vmem>>, %arg7: memref<8x128xf32, #tpu.memory_space<vmem>>) attributes {dimension_semantics = [#tpu.dimension_semantics<parallel>, #tpu.dimension_semantics<arbitrary>], iteration_bounds = array<i64: 1, 1>, scalar_prefetch = 0 : i64, scratch_operands = 0 : i64, tpu.core_type = #tpu.core_type<tc>, window_params = [{transform_indices = @transform_0, window_bounds = array<i64: 8, 32>}, {transform_indices = @transform_1, window_bounds = array<i64: 32, 128>}, {transform_indices = @transform_2, window_bounds = array<i64: 1, 128>}, {transform_indices = @transform_3, window_bounds = array<i64: 1, 128>}, {transform_indices = @transform_4, window_bounds = array<i64: 1, 128>}, {transform_indices = @transform_5, window_bounds = array<i64: 8, 128>}]} {
    %c0_i32 = arith.constant 0 : i32
    %0 = arith.cmpi eq, %arg1, %c0_i32 : i32
    %1 = arith.extui %0 : i1 to i32
    %c0_i32_0 = arith.constant 0 : i32
    %2 = arith.cmpi ne, %1, %c0_i32_0 : i32
    scf.if %2 {
      %cst_10 = arith.constant 0.000000e+00 : f32
      %13 = vector.broadcast %cst_10 : f32 to vector<8x128xf32>
      %c0_11 = arith.constant 0 : index
      %c0_12 = arith.constant 0 : index
      %14 = vector.load %arg7[%c0_11, %c0_12] : memref<8x128xf32, #tpu.memory_space<vmem>>, vector<8x128xf32>
      tpu.vector_store %arg7[%c0_11, %c0_12], %13 {strides = array<i32>} : memref<8x128xf32, #tpu.memory_space<vmem>>, vector<8x128xf32>,
    } else {
    }
    %c0 = arith.constant 0 : index
    %c0_1 = arith.constant 0 : index
    %3 = vector.load %arg7[%c0, %c0_1] : memref<8x128xf32, #tpu.memory_space<vmem>>, vector<8x128xf32>
    %c0_2 = arith.constant 0 : index
    %c0_3 = arith.constant 0 : index
    %4 = vector.load %arg2[%c0_2, %c0_3] : memref<8x32xf32, #tpu.memory_space<vmem>>, vector<8x32xf32>
    %5 = arith.truncf %4 : vector<8x32xf32> to vector<8x32xbf16>
    %c0_4 = arith.constant 0 : index
    %c0_5 = arith.constant 0 : index
    %6 = vector.load %arg3[%c0_4, %c0_5] : memref<32x128xbf16, #tpu.memory_space<vmem>>, vector<32x128xbf16>
    %cst = arith.constant dense<0.000000e+00> : vector<8x128xf32>
    %7 = tpu.matmul %5, %6, %cst {dimension_numbers = #tpu.dot_dimension_numbers<[1], [0], [0], [1], [0, 0, 1, 1], [], []>} : vector<8x32xbf16>, vector<32x128xbf16>, vector<8x128xf32> -> vector<8x128xf32>
    %8 = arith.addf %3, %7 : vector<8x128xf32>
    %c0_6 = arith.constant 0 : index
    %c0_7 = arith.constant 0 : index
    %9 = vector.load %arg7[%c0_6, %c0_7] : memref<8x128xf32, #tpu.memory_space<vmem>>, vector<8x128xf32>
    tpu.vector_store %arg7[%c0_6, %c0_7], %8 {strides = array<i32>} : memref<8x128xf32, #tpu.memory_space<vmem>>, vector<8x128xf32>,
    %c0_i32_8 = arith.constant 0 : i32
    %10 = arith.cmpi eq, %arg1, %c0_i32_8 : i32
    %11 = arith.extui %10 : i1 to i32
    %c0_i32_9 = arith.constant 0 : i32
    %12 = arith.cmpi ne, %11, %c0_i32_9 : i32
    scf.if %12 {
      %c0_10 = arith.constant 0 : index
      %c0_11 = arith.constant 0 : index
      %13 = vector.load %arg7[%c0_10, %c0_11] : memref<8x128xf32, #tpu.memory_space<vmem>>, vector<8x128xf32>
      %c0_12 = arith.constant 0 : index
      %c0_13 = arith.constant 0 : index
      %14 = vector.load %arg4[%c0_12, %c0_13] : memref<1x128xf32, #tpu.memory_space<vmem>>, vector<1x128xf32>
      %cst_14 = arith.constant dense<0.000000e+00> : vector<128xf32>
      %15 = vector.multi_reduction <add>, %13, %cst_14 [0] : vector<8x128xf32> to vector<128xf32>
      %16 = vector.shape_cast %15 : vector<128xf32> to vector<1x128xf32>
      %cst_15 = arith.constant 1.250000e-01 : f32
      %17 = vector.broadcast %cst_15 : f32 to vector<1x128xf32>
      %18 = arith.mulf %16, %17 : vector<1x128xf32>
      %19 = arith.addf %18, %14 : vector<1x128xf32>
      %20 = vector.broadcast %14 : vector<1x128xf32> to vector<8x128xf32>
      %21 = arith.addf %13, %20 : vector<8x128xf32>
      %22 = vector.broadcast %19 : vector<1x128xf32> to vector<8x128xf32>
      %23 = arith.subf %21, %22 : vector<8x128xf32>
      %24 = arith.mulf %23, %23 : vector<8x128xf32>
      %cst_16 = arith.constant dense<0.000000e+00> : vector<128xf32>
      %25 = vector.multi_reduction <add>, %24, %cst_16 [0] : vector<8x128xf32> to vector<128xf32>
      %26 = vector.shape_cast %25 : vector<128xf32> to vector<1x128xf32>
      %cst_17 = arith.constant 1.250000e-01 : f32
      %27 = vector.broadcast %cst_17 : f32 to vector<1x128xf32>
      %28 = arith.mulf %26, %27 : vector<1x128xf32>
      %cst_18 = arith.constant 9.99999974E-6 : f32
      %29 = vector.broadcast %cst_18 : f32 to vector<1x128xf32>
      %30 = arith.addf %28, %29 : vector<1x128xf32>
      %31 = math.rsqrt %30 : vector<1x128xf32>
      %c0_19 = arith.constant 0 : index
      %c0_20 = arith.constant 0 : index
      %32 = vector.load %arg5[%c0_19, %c0_20] : memref<1x128xf32, #tpu.memory_space<vmem>>, vector<1x128xf32>
      %33 = arith.mulf %32, %31 : vector<1x128xf32>
      %c0_21 = arith.constant 0 : index
      %c0_22 = arith.constant 0 : index
      %34 = vector.load %arg6[%c0_21, %c0_22] : memref<1x128xf32, #tpu.memory_space<vmem>>, vector<1x128xf32>
      %35 = arith.mulf %19, %33 : vector<1x128xf32>
      %36 = arith.subf %34, %35 : vector<1x128xf32>
      %37 = vector.broadcast %33 : vector<1x128xf32> to vector<8x128xf32>
      %38 = arith.mulf %21, %37 : vector<8x128xf32>
      %39 = vector.broadcast %36 : vector<1x128xf32> to vector<8x128xf32>
      %40 = arith.addf %38, %39 : vector<8x128xf32>
      %c0_23 = arith.constant 0 : index
      %c0_24 = arith.constant 0 : index
      %41 = vector.load %arg7[%c0_23, %c0_24] : memref<8x128xf32, #tpu.memory_space<vmem>>, vector<8x128xf32>
      tpu.vector_store %arg7[%c0_23, %c0_24], %40 {strides = array<i32>} : memref<8x128xf32, #tpu.memory_space<vmem>>, vector<8x128xf32>,
    } else {
    }
    return
  }
  func.func @transform_0(%arg0: i32, %arg1: i32) -> (i32, i32) {
    %c0_i32 = arith.constant 0 : i32
    %c0_i32_0 = arith.constant 0 : i32
    return %c0_i32, %arg1 : i32, i32
  }
  func.func @transform_1(%arg0: i32, %arg1: i32) -> (i32, i32) {
    %c0_i32 = arith.constant 0 : i32
    return %arg1, %arg0 : i32, i32
  }
  func.func @transform_2(%arg0: i32, %arg1: i32) -> (i32, i32) {
    %c0_i32 = arith.constant 0 : i32
    %c0_i32_0 = arith.constant 0 : i32
    return %c0_i32, %arg0 : i32, i32
  }
  func.func @transform_3(%arg0: i32, %arg1: i32) -> (i32, i32) {
    %c0_i32 = arith.constant 0 : i32
    %c0_i32_0 = arith.constant 0 : i32
    return %c0_i32, %arg0 : i32, i32
  }
  func.func @transform_4(%arg0: i32, %arg1: i32) -> (i32, i32) {
    %c0_i32 = arith.constant 0 : i32
    %c0_i32_0 = arith.constant 0 : i32
    return %c0_i32, %arg0 : i32, i32
  }
  func.func @transform_5(%arg0: i32, %arg1: i32) -> (i32, i32) {
    %c0_i32 = arith.constant 0 : i32
    %c0_i32_0 = arith.constant 0 : i32
    return %c0_i32, %arg0 : i32, i32
  }
}

</mosaic_0001>

<llo_original>
// kernel: tpu_custom_call.1
$region0: #{tpu_custom_call.1}
  #allocation0 [shape = 'u32[]', space=smem, size = 0x4, offset = 0x4, fixed_abs, tag = 'smem constant byte address 0x4 - core index']
  #allocation1 [shape = 'u32[144,128]{1,0:T(1,128)}', space=vmem, size = 0x12000, scoped, tag = 'internal scratch']
  %s0 = inlined_call_operand.hbm [shape: f32[8,32], index: 0, kind: input, shape index: {}]
  %s1 = inlined_call_operand.hbm [shape: bf16[32,128], index: 1, kind: input, shape index: {}]
  %s2 = inlined_call_operand.vmem [shape: f32[1,128], index: 2, kind: input, shape index: {}]
  %s3 = inlined_call_operand.vmem [shape: f32[1,128], index: 3, kind: input, shape index: {}]
  %s4 = inlined_call_operand.vmem [shape: f32[1,128], index: 4, kind: input, shape index: {}]
  %s5 = inlined_call_operand.hbm [shape: f32[8,128], index: 5, kind: output, shape index: {}]
  %s6 = sld [smem:[#allocation0]]
  $region46: #{tpu_custom_call.1} parent=0
    _
  %s8 = ssub.s32 1, %s6
  %s9 = scalar_select 0, %s8, %s6
  $region1: #{tpu_custom_call.1} parent=0
    #allocation2 [shape = 'u8[4096]{0}', space=vmem, size = 0x1000, scoped, tag = 'input window, operand 0, single buffered']
    #allocation3 [shape = 's32[1]{0}', space=sflag, size = 0x4, scoped, tag = 'scoped memory for tpu_custom_call.1']
    #allocation4 [shape = 's32[1]{0}', space=sflag, size = 0x4, scoped, tag = 'scoped memory for tpu_custom_call.1']
    #allocation5 [shape = 'u8[8192]{0}', space=vmem, size = 0x2000, scoped, tag = 'input window, operand 1, single buffered']
    #allocation6 [shape = 's32[1]{0}', space=sflag, size = 0x4, scoped, tag = 'scoped memory for tpu_custom_call.1']
    #allocation7 [shape = 'u8[4096]{0}', space=vmem, size = 0x1000, scoped, tag = 'output window, operand 0, single buffered']
    %10 = vsyncpa [#allocation3], 0
    %11 = vsyncpa [#allocation6], 0
    %12 = vsyncpa [#allocation4], 0
    // Predicated region
    $region2: #{tpu_custom_call.1} parent=1 // pred_check
      _
    $region3: #{tpu_custom_call.1} parent=1 // pred_check_branch
      %14 = sbr.rel (0) target = $region5
    $region4: #{tpu_custom_call.1} parent=1 // pred_region
      %s16 = ssub.s32 128, 128
      %17 = vsyncadd [#allocation3], %s16
      %s19 = sshll.u32 [#allocation2], 4
      %s20 = int_to_ptr.vmem [resolvable:$true] %s19
      %22 = dma.hbm_to_vmem [thread:$0]  %s0, 128, %s20, [#allocation3]
    $region5: #{tpu_custom_call.1} parent=1 // pred_fallthru
      _
    // Predicated region
    $region6: #{tpu_custom_call.1} parent=1 // pred_check
      _
    $region7: #{tpu_custom_call.1} parent=1 // pred_check_branch
      %24 = sbr.rel (0) target = $region9
    $region8: #{tpu_custom_call.1} parent=1 // pred_region
      %s26 = ssub.s32 256, 256
      %27 = vsyncadd [#allocation6], %s26
      %s28 = sshll.u32 [#allocation5], 4
      %s29 = int_to_ptr.vmem [resolvable:$true] %s28
      %34 = dma.hbm_to_vmem [thread:$0]  %s1, 256, %s29, [#allocation6], 64, 64, 4
    $region9: #{tpu_custom_call.1} parent=1 // pred_fallthru
      _
    // Predicated region
    $region10: #{tpu_custom_call.1} parent=1 // pred_check
      _
    $region11: #{tpu_custom_call.1} parent=1 // pred_check_branch
      %36 = sbr.rel (0) target = $region13
    $region12: #{tpu_custom_call.1} parent=1 // pred_region
      _
    $region13: #{tpu_custom_call.1} parent=1 // pred_fallthru
      _
    // Predicated region
    $region14: #{tpu_custom_call.1} parent=1 // pred_check
      _
    $region15: #{tpu_custom_call.1} parent=1 // pred_check_branch
      %38 = sbr.rel (0) target = $region17
    $region16: #{tpu_custom_call.1} parent=1 // pred_region
      _
    $region17: #{tpu_custom_call.1} parent=1 // pred_fallthru
      _
    // Predicated region
    $region18: #{tpu_custom_call.1} parent=1 // pred_check
      _
    $region19: #{tpu_custom_call.1} parent=1 // pred_check_branch
      %40 = sbr.rel (0) target = $region21
    $region20: #{tpu_custom_call.1} parent=1 // pred_region
      _
    $region21: #{tpu_custom_call.1} parent=1 // pred_fallthru
      _
    // Predicated region
    $region22: #{tpu_custom_call.1} parent=1 // pred_check
      _
    $region23: #{tpu_custom_call.1} parent=1 // pred_check_branch
      %42 = sbr.rel (0) target = $region25
    $region24: #{tpu_custom_call.1} parent=1 // pred_region
      %43 = dma.done [#allocation3], 128
    $region25: #{tpu_custom_call.1} parent=1 // pred_fallthru
      _
    // Predicated region
    $region26: #{tpu_custom_call.1} parent=1 // pred_check
      _
    $region27: #{tpu_custom_call.1} parent=1 // pred_check_branch
      %45 = sbr.rel (0) target = $region29
    $region28: #{tpu_custom_call.1} parent=1 // pred_region
      %46 = dma.done [#allocation6], 256
    $region29: #{tpu_custom_call.1} parent=1 // pred_fallthru
      _
    %p48 = scmp.eq.s32.totalorder 0, 0
    // Predicated region
    $region30: #{tpu_custom_call.1} parent=1 // pred_check
      %p49 = pneg %p48
    $region31: #{tpu_custom_call.1} parent=1 // pred_check_branch
      %51 = sbr.rel (%p49) target = $region33
    $region32: #{tpu_custom_call.1} parent=1 // pred_region
      %52 = vst [vmem:[#allocation7] sm:$0xff] 0.0
    $region33: #{tpu_custom_call.1} parent=1 // pred_fallthru
      _
    %v53 = vld [vmem:[#allocation7] sm:$0xff]
    %v54 = vld [vmem:[#allocation2] sm:$0xff]
    %v55 = vpack.c.bf16 %v54, %v54
    %v56 = vld [vmem:[#allocation5] sm:$0xf]
    %v57 = vld [vmem:[#allocation5 + $0x4] sm:$0xf]
    %v58 = vld [vmem:[#allocation5 + $0x8] sm:$0xf]
    %v59 = vld [vmem:[#allocation5 + $0xc] sm:$0xf]
    %v64 = vunpack.c.l.b16 %v56
    %v65 = vunpack.c.l.b16 %v57
    %v66 = vunpack.c.l.b16 %v58
    %v67 = vunpack.c.l.b16 %v59
    %v68 = vpack.c.b16 %v65, %v64
    %v69 = vpack.c.b16 %v67, %v66
    %vm72 = vcmask 261120
    %v74 = vsel %vm72, %v55, 0
    %76 = vmatprep.subr.bf16.mxu0 0
    %77 = vmatpush1.bf16.msra.mxu0 %v68
    %78 = vmatprep.subr.bf16.mxu0 0
    %79 = vmatpush1.bf16.msra.mxu0 %v69
    %80 = vmatprep.subr.bf16.mxu0 0
    %81 = vmatpush1.bf16.msra.mxu0 0
    %82 = vmatprep.subr.bf16.mxu0 0
    %83 = vmatpush1.bf16.msra.mxu0 0
    %84 = vmatprep.subr.bf16.mxu0 0
    %85 = vmatpush1.bf16.msra.mxu0 0
    %86 = vmatprep.subr.bf16.mxu0 0
    %87 = vmatpush1.bf16.msra.mxu0 0
    %88 = vmatprep.subr.bf16.mxu0 0
    %89 = vmatpush1.bf16.msra.mxu0 0
    %90 = vmatprep.subr.bf16.mxu0 0
    %91 = vmatpush1.bf16.msra.mxu0 0
    %92 = vmatprep.subr.bf16.mxu0 0
    %93 = vmatpush1.bf16.msra.mxu0 0
    %94 = vmatprep.subr.bf16.mxu0 0
    %95 = vmatpush1.bf16.msra.mxu0 0
    %96 = vmatprep.subr.bf16.mxu0 0
    %97 = vmatpush1.bf16.msra.mxu0 0
    %98 = vmatprep.subr.bf16.mxu0 0
    %99 = vmatpush1.bf16.msra.mxu0 0
    %100 = vmatprep.subr.bf16.mxu0 0
    %101 = vmatpush1.bf16.msra.mxu0 0
    %102 = vmatprep.subr.bf16.mxu0 0
    %103 = vmatpush1.bf16.msra.mxu0 0
    %104 = vmatprep.subr.bf16.mxu0 0
    %105 = vmatpush1.bf16.msra.mxu0 0
    %106 = vmatprep.subr.bf16.mxu0 0
    %107 = vmatpush1.bf16.msra.mxu0 0
    %108 = vmatprep.mubr.bf16.mxu0 0
    %109 = vmatmul.mubr.bf16.gmra.mrb[0].mxu0 %v74
    %v110 = vpop.f32.mrb[0].mxu0
    %v111 = vadd.f32 0.0, %v110
    %v112 = vpop.f32.mrb[0].mxu0
    %v113 = vpop.f32.mrb[0].mxu0
    %v114 = vpop.f32.mrb[0].mxu0
    %115 = vdwg.mxu0
    %v116 = vadd.f32 %v53, %v111
    %117 = vst [vmem:[#allocation7] sm:$0xff] %v116
    // Predicated region
    $region34: #{tpu_custom_call.1} parent=1 // pred_check
      %p118 = pneg %p48
    $region35: #{tpu_custom_call.1} parent=1 // pred_check_branch
      %120 = sbr.rel (%p118) target = $region37
    $region36: #{tpu_custom_call.1} parent=1 // pred_region
      %v121 = vld [vmem:[#allocation7] sm:$0xff]
      %v122 = vld [vmem:[%s2] sm:$0x1]
      %v123 = vrot.slane %v121, 4
      %v124 = vadd.f32 %v121, %v123
      %v125 = vrot.slane %v124, 2
      %v126 = vadd.f32 %v124, %v125
      %v127 = vrot.slane %v126, 1
      %v128 = vadd.f32 %v126, %v127
      %v129 = vmul.f32 %v128, 0.125
      %v130 = vadd.f32 %v129, %v122
      %v132 = vlaneseq
      %v133 = vshrl.u32 %v132, 7
      %v134 = vsub.s32 0, %v133
      %v135 = vrot.slane %v122, %v134
      %v137 = vadd.f32 %v121, %v135
      %v138 = vlaneseq
      %v139 = vshrl.u32 %v138, 7
      %v140 = vsub.s32 0, %v139
      %v141 = vrot.slane %v130, %v140
      %v142 = vsub.f32 %v137, %v141
      %v143 = vmul.f32 %v142, %v142
      %v144 = vrot.slane %v143, 4
      %v145 = vadd.f32 %v143, %v144
      %v146 = vrot.slane %v145, 2
      %v147 = vadd.f32 %v145, %v146
      %v148 = vrot.slane %v147, 1
      %v149 = vadd.f32 %v147, %v148
      %v150 = vmul.f32 %v149, 0.125
      %v151 = vadd.f32 %v150, 1e-05
      %v152 = vrsqrt.pop %v151
      %v153 = vld [vmem:[%s3] sm:$0x1]
      %v154 = vmul.f32 %v153, %v152
      %v155 = vld [vmem:[%s4] sm:$0x1]
      %v156 = vmul.f32 %v130, %v154
      %v157 = vsub.f32 %v155, %v156
      %v159 = vlaneseq
      %v160 = vshrl.u32 %v159, 7
      %v161 = vsub.s32 0, %v160
      %v162 = vrot.slane %v154, %v161
      %v164 = vmul.f32 %v137, %v162
      %v166 = vlaneseq
      %v167 = vshrl.u32 %v166, 7
      %v168 = vsub.s32 0, %v167
      %v169 = vrot.slane %v157, %v168
      %v171 = vadd.f32 %v164, %v169
      %172 = vst [vmem:[#allocation7] sm:$0xff] %v171
    $region37: #{tpu_custom_call.1} parent=1 // pred_fallthru
      _
    // Predicated region
    $region38: #{tpu_custom_call.1} parent=1 // pred_check
      _
    $region39: #{tpu_custom_call.1} parent=1 // pred_check_branch
      %174 = sbr.rel (0) target = $region41
    $region40: #{tpu_custom_call.1} parent=1 // pred_region
      %s176 = ssub.s32 128, 128
      %177 = vsyncadd [#allocation4], %s176
      %s179 = sshll.u32 [#allocation7], 4
      %s180 = int_to_ptr.vmem [resolvable:$true] %s179
      %182 = dma.vmem_to_hbm [thread:$0]  %s180, 128, %s5, [#allocation4]
    $region41: #{tpu_custom_call.1} parent=1 // pred_fallthru
      _
    // Predicated region
    $region42: #{tpu_custom_call.1} parent=1 // pred_check
      _
    $region43: #{tpu_custom_call.1} parent=1 // pred_check_branch
      %184 = sbr.rel (0) target = $region45
    $region44: #{tpu_custom_call.1} parent=1 // pred_region
      %185 = dma.done [#allocation4], 128
    $region45: #{tpu_custom_call.1} parent=1 // pred_fallthru
      _
    %186 = vsyncpa [#allocation3], 1
    %187 = vsyncpa [#allocation6], 1
    %188 = vsyncpa [#allocation4], 1

</llo_original>
